<compile_context>
chip_gen: v5e
topology: v5e:2x2
jax: 0.10.0
libtpu: 0.0.40
codegen_flags: <defaults>
</compile_context>

<pallas_src>
import jax
import jax.numpy as jnp
from jax.experimental import pallas as pl
from jax.experimental.pallas import tpu as pltpu

LANE = 128


def _round_up(x, m):
    return (x + m - 1) // m * m


def _pad2d(a, rows, cols):
    r, c = a.shape
    return jnp.pad(a, ((0, rows - r), (0, cols - c)))


def sentiment_fc_kernel(ids_ref,              # VMEM (1, tile_n) int32
                        embT_ref,             # VMEM (H1p, Vp)   bf16
                        w1T_ref, b1_ref,      # (H2p, H1p) bf16, (H2p, 1) f32
                        w2T_ref, b2_ref,      # (H3p, H2p) bf16, (H3p, 1) f32
                        w3T_ref, b3_ref,      # (O,   H3p) bf16, (O,   1) f32
                        out_ref):             # VMEM (O, tile_n) f32
    vocab_p = embT_ref.shape[1]
    tile_n = ids_ref.shape[1]

    # --- Embedding lookup as a one-hot bf16 MXU matmul (vectorized gather). ---
    # onehot[v, t] = (ids[t] == v); exact in bf16, so x below equals the
    # bf16-rounded embedding rows exactly (f32 accumulation of a single term).
    # TODO(synk): for large vocabularies that do not fit VMEM, keep the table
    # in HBM (memory_space=pl.ANY) and DMA-gather the tile's rows instead.
    ids = ids_ref[...]                                                # (1, T)
    iota_v = jax.lax.broadcasted_iota(jnp.int32, (vocab_p, tile_n), 0)
    onehot = jnp.where(iota_v == ids, 1.0, 0.0).astype(jnp.bfloat16)  # (Vp, T)

    x = jnp.dot(embT_ref[...], onehot,
                preferred_element_type=jnp.float32)                   # (H1p, T)
    x = x.astype(jnp.bfloat16)

    # --- Fused 3-layer MLP (transposed): bf16 MXU inputs, f32 accumulation,
    #     f32 bias/ReLU epilogue (broadcast over the lane/token axis). ---
    h1 = jnp.dot(w1T_ref[...], x,
                 preferred_element_type=jnp.float32) + b1_ref[...]    # (H2p, T)
    h1 = jnp.maximum(h1, 0.0).astype(jnp.bfloat16)

    h2 = jnp.dot(w2T_ref[...], h1,
                 preferred_element_type=jnp.float32) + b2_ref[...]    # (H3p, T)
    h2 = jnp.maximum(h2, 0.0).astype(jnp.bfloat16)

    out_ref[...] = (
        jnp.dot(w3T_ref[...], h2,
                preferred_element_type=jnp.float32) + b3_ref[...]     # (O, T)
    )


def sentiment_fc_forward(x_ids, params, *, tile_n=None):
    """x_ids: int (batch, seq) token ids -> float32 (batch, seq, output_size)."""
    emb, w1, b1, w2, b2, w3, b3 = params
    vocab, h1 = emb.shape
    h2 = w1.shape[1]
    h3 = w2.shape[1]
    out_size = w3.shape[1]

    h1p, h2p, h3p = (_round_up(d, LANE) for d in (h1, h2, h3))
    vocab_p = _round_up(vocab, LANE)

    # Transposed, zero-padded (exact), bf16 weights for the MXU.
    embT = _pad2d(emb.astype(jnp.float32).T, h1p, vocab_p).astype(jnp.bfloat16)
    w1T = _pad2d(w1.astype(jnp.float32).T, h2p, h1p).astype(jnp.bfloat16)
    w2T = _pad2d(w2.astype(jnp.float32).T, h3p, h2p).astype(jnp.bfloat16)
    w3T = _pad2d(w3.astype(jnp.float32).T, out_size, h3p).astype(jnp.bfloat16)
    b1T = _pad2d(b1.reshape(-1, 1).astype(jnp.float32), h2p, 1)
    b2T = _pad2d(b2.reshape(-1, 1).astype(jnp.float32), h3p, 1)
    b3T = b3.reshape(-1, 1).astype(jnp.float32)

    batch, seq = x_ids.shape
    n = batch * seq
    # Clamp ids so an out-of-range token can never select a padded/garbage row.
    ids = jnp.clip(x_ids.reshape(-1).astype(jnp.int32), 0, vocab - 1)

    if tile_n is None:
        tile_n = min(512, _round_up(n, 256))
    assert tile_n % 128 == 0, "tile_n must be lane-dense (multiple of 128)"
    n_pad = _round_up(n, tile_n)
    ids = jnp.pad(ids, (0, n_pad - n)).reshape(1, n_pad)
    grid = (n_pad // tile_n,)

    out_t = pl.pallas_call(
        sentiment_fc_kernel,
        out_shape=jax.ShapeDtypeStruct((out_size, n_pad), jnp.float32),
        grid_spec=pltpu.PrefetchScalarGridSpec(
            num_scalar_prefetch=0,
            grid=grid,
            in_specs=[
                pl.BlockSpec((1, tile_n), lambda i: (0, i)),        # ids (per tile)
                pl.BlockSpec((h1p, vocab_p), lambda i: (0, 0)),     # emb^T (resident)
                pl.BlockSpec((h2p, h1p), lambda i: (0, 0)),         # w1^T
                pl.BlockSpec((h2p, 1), lambda i: (0, 0)),           # b1
                pl.BlockSpec((h3p, h2p), lambda i: (0, 0)),         # w2^T
                pl.BlockSpec((h3p, 1), lambda i: (0, 0)),           # b2
                pl.BlockSpec((out_size, h3p), lambda i: (0, 0)),    # w3^T
                pl.BlockSpec((out_size, 1), lambda i: (0, 0)),      # b3
            ],
            out_specs=pl.BlockSpec((out_size, tile_n), lambda i: (0, i)),
        ),
        compiler_params=pltpu.CompilerParams(
            dimension_semantics=("parallel",),
            vmem_limit_bytes=32 * 1024 * 1024,
        ),
    )(ids, embT, w1T, b1T, w2T, b2T, w3T, b3T)

    # Padded token columns (id 0) produce garbage -> slice [:n] before reshape.
    return out_t[:, :n].T.reshape(batch, seq, out_size)


def init_params(key, input_size, hidden_1, hidden_2, hidden_3, output_size):
    """Module-shaped params. Linear weights stored as (in, out) = PyTorch W.T,
    so forward is x @ W + b, matching y = x @ W.T + b."""
    ks = jax.random.split(key, 7)

    def unif(k, shape, fan_in):
        bound = 1.0 / jnp.sqrt(jnp.float32(fan_in))
        return jax.random.uniform(k, shape, jnp.float32, -bound, bound)

    emb = jax.random.normal(ks[0], (input_size, hidden_1), jnp.float32)
    w1 = unif(ks[1], (hidden_1, hidden_2), hidden_1)
    b1 = unif(ks[2], (hidden_2,), hidden_1)
    w2 = unif(ks[3], (hidden_2, hidden_3), hidden_2)
    b2 = unif(ks[4], (hidden_3,), hidden_2)
    w3 = unif(ks[5], (hidden_3, output_size), hidden_3)
    b3 = unif(ks[6], (output_size,), hidden_3)
    return emb, w1, b1, w2, b2, w3, b3


def ref_forward_bf16(x_ids, params):
    """Same math as the kernel (bf16 MXU inputs, f32 accumulation)."""
    emb, w1, b1, w2, b2, w3, b3 = params
    x = emb.astype(jnp.bfloat16)[x_ids]
    h = jnp.dot(x, w1.astype(jnp.bfloat16), preferred_element_type=jnp.float32) + b1
    h = jnp.maximum(h, 0.0).astype(jnp.bfloat16)
    h = jnp.dot(h, w2.astype(jnp.bfloat16), preferred_element_type=jnp.float32) + b2
    h = jnp.maximum(h, 0.0).astype(jnp.bfloat16)
    return jnp.dot(h, w3.astype(jnp.bfloat16), preferred_element_type=jnp.float32) + b3


def ref_forward_f32(x_ids, params):
    """Original (pure f32) module semantics."""
    emb, w1, b1, w2, b2, w3, b3 = params
    h = jnp.maximum(emb[x_ids] @ w1 + b1, 0.0)
    h = jnp.maximum(h @ w2 + b2, 0.0)
    return h @ w3 + b3


if __name__ == "__main__":
    # Small shapes consistent with the module.
    input_size = 32      # vocab size
    hidden_1 = 32        # embedding dim == fc1 input
    hidden_2 = 64
    hidden_3 = 32
    output_size = 8
    batch, seq = 2, 8

    key = jax.random.PRNGKey(0)
    k_param, k_ids = jax.random.split(key)

    params = init_params(k_param, input_size, hidden_1, hidden_2, hidden_3, output_size)
    x = jax.random.randint(k_ids, (batch, seq), 0, input_size, dtype=jnp.int32)

    out = sentiment_fc_forward(x, params)
    jax.block_until_ready(out)
    assert out.shape == (batch, seq, output_size)

    # Kernel-matched reference (same bf16 weight rounding, f32 accumulation).
    ref_q = ref_forward_bf16(x, params)
    assert jnp.allclose(out, ref_q, atol=1e-2, rtol=1e-2), \
        float(jnp.max(jnp.abs(out - ref_q)))
    # Loose sanity check against the pure-f32 module (bf16 quantization error only).
    ref_f = ref_forward_f32(x, params)
    assert jnp.allclose(out, ref_f, atol=1e-1, rtol=1e-1), \
        float(jnp.max(jnp.abs(out - ref_f)))

    print("KERNEL_OK")
</pallas_src>

<mosaic_0001>
module attributes {stable_mosaic.version = 11 : i64} {
  func.func @sentiment_fc_kernel(%arg0: i32, %arg1: memref<1x256xi32, #tpu.memory_space<vmem>>, %arg2: memref<128x128xbf16, #tpu.memory_space<vmem>>, %arg3: memref<128x128xbf16, #tpu.memory_space<vmem>>, %arg4: memref<128x1xf32, #tpu.memory_space<vmem>>, %arg5: memref<128x128xbf16, #tpu.memory_space<vmem>>, %arg6: memref<128x1xf32, #tpu.memory_space<vmem>>, %arg7: memref<8x128xbf16, #tpu.memory_space<vmem>>, %arg8: memref<8x1xf32, #tpu.memory_space<vmem>>, %arg9: memref<8x256xf32, #tpu.memory_space<vmem>>) attributes {dimension_semantics = [#tpu.dimension_semantics<parallel>], iteration_bounds = array<i64: 1>, scalar_prefetch = 0 : i64, scratch_operands = 0 : i64, tpu.core_type = #tpu.core_type<tc>, window_params = [{transform_indices = @transform_0, window_bounds = array<i64: 1, 256>}, {pipeline_mode = #tpu.pipeline_mode<synchronous>, transform_indices = @transform_1, window_bounds = array<i64: 128, 128>}, {pipeline_mode = #tpu.pipeline_mode<synchronous>, transform_indices = @transform_2, window_bounds = array<i64: 128, 128>}, {pipeline_mode = #tpu.pipeline_mode<synchronous>, transform_indices = @transform_3, window_bounds = array<i64: 128, 1>}, {pipeline_mode = #tpu.pipeline_mode<synchronous>, transform_indices = @transform_4, window_bounds = array<i64: 128, 128>}, {pipeline_mode = #tpu.pipeline_mode<synchronous>, transform_indices = @transform_5, window_bounds = array<i64: 128, 1>}, {pipeline_mode = #tpu.pipeline_mode<synchronous>, transform_indices = @transform_6, window_bounds = array<i64: 8, 128>}, {pipeline_mode = #tpu.pipeline_mode<synchronous>, transform_indices = @transform_7, window_bounds = array<i64: 8, 1>}, {transform_indices = @transform_8, window_bounds = array<i64: 8, 256>}]} {
    %c0 = arith.constant 0 : index
    %c0_0 = arith.constant 0 : index
    %0 = vector.load %arg1[%c0, %c0_0] : memref<1x256xi32, #tpu.memory_space<vmem>>, vector<1x256xi32>
    %1 = tpu.iota {dimensions = array<i32: 0>} : vector<128x256xi32>
    %2 = vector.broadcast %0 : vector<1x256xi32> to vector<128x256xi32>
    %3 = arith.cmpi eq, %1, %2 : vector<128x256xi32>
    %cst = arith.constant 1.000000e+00 : f32
    %cst_1 = arith.constant 0.000000e+00 : f32
    %4 = vector.broadcast %cst : f32 to vector<128x256xf32>
    %5 = vector.broadcast %cst_1 : f32 to vector<128x256xf32>
    %6 = arith.select %3, %4, %5 : vector<128x256xi1>, vector<128x256xf32>
    %7 = arith.truncf %6 : vector<128x256xf32> to vector<128x256xbf16>
    %c0_2 = arith.constant 0 : index
    %c0_3 = arith.constant 0 : index
    %8 = vector.load %arg2[%c0_2, %c0_3] : memref<128x128xbf16, #tpu.memory_space<vmem>>, vector<128x128xbf16>
    %cst_4 = arith.constant dense<0.000000e+00> : vector<128x256xf32>
    %9 = tpu.matmul %8, %7, %cst_4 {dimension_numbers = #tpu.dot_dimension_numbers<[1], [0], [0], [1], [0, 0, 1, 1], [], []>} : vector<128x128xbf16>, vector<128x256xbf16>, vector<128x256xf32> -> vector<128x256xf32>
    %10 = arith.truncf %9 : vector<128x256xf32> to vector<128x256xbf16>
    %c0_5 = arith.constant 0 : index
    %c0_6 = arith.constant 0 : index
    %11 = vector.load %arg3[%c0_5, %c0_6] : memref<128x128xbf16, #tpu.memory_space<vmem>>, vector<128x128xbf16>
    %cst_7 = arith.constant dense<0.000000e+00> : vector<128x256xf32>
    %12 = tpu.matmul %11, %10, %cst_7 {dimension_numbers = #tpu.dot_dimension_numbers<[1], [0], [0], [1], [0, 0, 1, 1], [], []>} : vector<128x128xbf16>, vector<128x256xbf16>, vector<128x256xf32> -> vector<128x256xf32>
    %c0_8 = arith.constant 0 : index
    %c0_9 = arith.constant 0 : index
    %13 = vector.load %arg4[%c0_8, %c0_9] : memref<128x1xf32, #tpu.memory_space<vmem>>, vector<128x1xf32>
    %14 = vector.broadcast %13 : vector<128x1xf32> to vector<128x256xf32>
    %15 = arith.addf %12, %14 : vector<128x256xf32>
    %cst_10 = arith.constant 0.000000e+00 : f32
    %16 = vector.broadcast %cst_10 : f32 to vector<128x256xf32>
    %17 = arith.maximumf %15, %16 : vector<128x256xf32>
    %18 = arith.truncf %17 : vector<128x256xf32> to vector<128x256xbf16>
    %c0_11 = arith.constant 0 : index
    %c0_12 = arith.constant 0 : index
    %19 = vector.load %arg5[%c0_11, %c0_12] : memref<128x128xbf16, #tpu.memory_space<vmem>>, vector<128x128xbf16>
    %cst_13 = arith.constant dense<0.000000e+00> : vector<128x256xf32>
    %20 = tpu.matmul %19, %18, %cst_13 {dimension_numbers = #tpu.dot_dimension_numbers<[1], [0], [0], [1], [0, 0, 1, 1], [], []>} : vector<128x128xbf16>, vector<128x256xbf16>, vector<128x256xf32> -> vector<128x256xf32>
    %c0_14 = arith.constant 0 : index
    %c0_15 = arith.constant 0 : index
    %21 = vector.load %arg6[%c0_14, %c0_15] : memref<128x1xf32, #tpu.memory_space<vmem>>, vector<128x1xf32>
    %22 = vector.broadcast %21 : vector<128x1xf32> to vector<128x256xf32>
    %23 = arith.addf %20, %22 : vector<128x256xf32>
    %cst_16 = arith.constant 0.000000e+00 : f32
    %24 = vector.broadcast %cst_16 : f32 to vector<128x256xf32>
    %25 = arith.maximumf %23, %24 : vector<128x256xf32>
    %26 = arith.truncf %25 : vector<128x256xf32> to vector<128x256xbf16>
    %c0_17 = arith.constant 0 : index
    %c0_18 = arith.constant 0 : index
    %27 = vector.load %arg7[%c0_17, %c0_18] : memref<8x128xbf16, #tpu.memory_space<vmem>>, vector<8x128xbf16>
    %cst_19 = arith.constant dense<0.000000e+00> : vector<8x256xf32>
    %28 = tpu.matmul %27, %26, %cst_19 {dimension_numbers = #tpu.dot_dimension_numbers<[1], [0], [0], [1], [0, 0, 1, 1], [], []>} : vector<8x128xbf16>, vector<128x256xbf16>, vector<8x256xf32> -> vector<8x256xf32>
    %c0_20 = arith.constant 0 : index
    %c0_21 = arith.constant 0 : index
    %29 = vector.load %arg8[%c0_20, %c0_21] : memref<8x1xf32, #tpu.memory_space<vmem>>, vector<8x1xf32>
    %30 = vector.broadcast %29 : vector<8x1xf32> to vector<8x256xf32>
    %31 = arith.addf %28, %30 : vector<8x256xf32>
    %c0_22 = arith.constant 0 : index
    %c0_23 = arith.constant 0 : index
    %32 = vector.load %arg9[%c0_22, %c0_23] : memref<8x256xf32, #tpu.memory_space<vmem>>, vector<8x256xf32>
    tpu.vector_store %arg9[%c0_22, %c0_23], %31 {strides = array<i32>} : memref<8x256xf32, #tpu.memory_space<vmem>>, vector<8x256xf32>,
    return
  }
  func.func @transform_0(%arg0: i32) -> (i32, i32) {
    %c0_i32 = arith.constant 0 : i32
    %c0_i32_0 = arith.constant 0 : i32
    return %c0_i32, %arg0 : i32, i32
  }
  func.func @transform_1(%arg0: i32) -> (i32, i32) {
    %c0_i32 = arith.constant 0 : i32
    %c0_i32_0 = arith.constant 0 : i32
    %c0_i32_1 = arith.constant 0 : i32
    return %c0_i32, %c0_i32_0 : i32, i32
  }
  func.func @transform_2(%arg0: i32) -> (i32, i32) {
    %c0_i32 = arith.constant 0 : i32
    %c0_i32_0 = arith.constant 0 : i32
    %c0_i32_1 = arith.constant 0 : i32
    return %c0_i32, %c0_i32_0 : i32, i32
  }
  func.func @transform_3(%arg0: i32) -> (i32, i32) {
    %c0_i32 = arith.constant 0 : i32
    %c0_i32_0 = arith.constant 0 : i32
    %c0_i32_1 = arith.constant 0 : i32
    return %c0_i32, %c0_i32_0 : i32, i32
  }
  func.func @transform_4(%arg0: i32) -> (i32, i32) {
    %c0_i32 = arith.constant 0 : i32
    %c0_i32_0 = arith.constant 0 : i32
    %c0_i32_1 = arith.constant 0 : i32
    return %c0_i32, %c0_i32_0 : i32, i32
  }
  func.func @transform_5(%arg0: i32) -> (i32, i32) {
    %c0_i32 = arith.constant 0 : i32
    %c0_i32_0 = arith.constant 0 : i32
    %c0_i32_1 = arith.constant 0 : i32
    return %c0_i32, %c0_i32_0 : i32, i32
  }
  func.func @transform_6(%arg0: i32) -> (i32, i32) {
    %c0_i32 = arith.constant 0 : i32
    %c0_i32_0 = arith.constant 0 : i32
    %c0_i32_1 = arith.constant 0 : i32
    return %c0_i32, %c0_i32_0 : i32, i32
  }
  func.func @transform_7(%arg0: i32) -> (i32, i32) {
    %c0_i32 = arith.constant 0 : i32
    %c0_i32_0 = arith.constant 0 : i32
    %c0_i32_1 = arith.constant 0 : i32
    return %c0_i32, %c0_i32_0 : i32, i32
  }
  func.func @transform_8(%arg0: i32) -> (i32, i32) {
    %c0_i32 = arith.constant 0 : i32
    %c0_i32_0 = arith.constant 0 : i32
    return %c0_i32, %arg0 : i32, i32
  }
}

</mosaic_0001>

<llo_original>
// kernel: tpu_custom_call.1
$region0: #{tpu_custom_call.1}
  #allocation0 [shape = 'u32[]', space=smem, size = 0x4, offset = 0x4, fixed_abs, tag = 'smem constant byte address 0x4 - core index']
  #allocation1 [shape = 'u32[72,128]{1,0:T(1,128)}', space=vmem, size = 0x9000, scoped, tag = 'internal scratch']
  %s0 = inlined_call_operand.vmem [shape: s32[1,256], index: 0, kind: input, shape index: {}]
  %s1 = inlined_call_operand.vmem [shape: bf16[128,128], index: 1, kind: input, shape index: {}]
  %s2 = inlined_call_operand.vmem [shape: bf16[128,128], index: 2, kind: input, shape index: {}]
  %s3 = inlined_call_operand.vmem [shape: f32[128,1], index: 3, kind: input, shape index: {}]
  %s4 = inlined_call_operand.vmem [shape: bf16[128,128], index: 4, kind: input, shape index: {}]
  %s5 = inlined_call_operand.vmem [shape: f32[128,1], index: 5, kind: input, shape index: {}]
  %s6 = inlined_call_operand.vmem [shape: bf16[8,128], index: 6, kind: input, shape index: {}]
  %s7 = inlined_call_operand.vmem [shape: f32[8,1], index: 7, kind: input, shape index: {}]
  %s8 = inlined_call_operand.hbm [shape: f32[8,256], index: 8, kind: output, shape index: {}]
  %s9 = sld [smem:[#allocation0]]
  $region42: #{tpu_custom_call.1} parent=0
    _
  %s11 = ssub.s32 1, %s9
  %s12 = scalar_select 0, %s11, %s9
  $region1: #{tpu_custom_call.1} parent=0
    #allocation2 [shape = 'u8[8192]{0}', space=vmem, size = 0x2000, scoped, tag = 'output window, operand 0, single buffered']
    #allocation3 [shape = 's32[1]{0}', space=sflag, size = 0x4, scoped, tag = 'scoped memory for tpu_custom_call.1']
    %13 = vsyncpa [#allocation3], 0
    // Predicated region
    $region2: #{tpu_custom_call.1} parent=1 // pred_check
      _
    $region3: #{tpu_custom_call.1} parent=1 // pred_check_branch
      %15 = sbr.rel (0) target = $region5
    $region4: #{tpu_custom_call.1} parent=1 // pred_region
      _
    $region5: #{tpu_custom_call.1} parent=1 // pred_fallthru
      _
    // Predicated region
    $region6: #{tpu_custom_call.1} parent=1 // pred_check
      _
    $region7: #{tpu_custom_call.1} parent=1 // pred_check_branch
      %17 = sbr.rel (0) target = $region9
    $region8: #{tpu_custom_call.1} parent=1 // pred_region
      _
    $region9: #{tpu_custom_call.1} parent=1 // pred_fallthru
      _
    // Predicated region
    $region10: #{tpu_custom_call.1} parent=1 // pred_check
      _
    $region11: #{tpu_custom_call.1} parent=1 // pred_check_branch
      %19 = sbr.rel (0) target = $region13
    $region12: #{tpu_custom_call.1} parent=1 // pred_region
      _
    $region13: #{tpu_custom_call.1} parent=1 // pred_fallthru
      _
    // Predicated region
    $region14: #{tpu_custom_call.1} parent=1 // pred_check
      _
    $region15: #{tpu_custom_call.1} parent=1 // pred_check_branch
      %21 = sbr.rel (0) target = $region17
    $region16: #{tpu_custom_call.1} parent=1 // pred_region
      _
    $region17: #{tpu_custom_call.1} parent=1 // pred_fallthru
      _
    // Predicated region
    $region18: #{tpu_custom_call.1} parent=1 // pred_check
      _
    $region19: #{tpu_custom_call.1} parent=1 // pred_check_branch
      %23 = sbr.rel (0) target = $region21
    $region20: #{tpu_custom_call.1} parent=1 // pred_region
      _
    $region21: #{tpu_custom_call.1} parent=1 // pred_fallthru
      _
    // Predicated region
    $region22: #{tpu_custom_call.1} parent=1 // pred_check
      _
    $region23: #{tpu_custom_call.1} parent=1 // pred_check_branch
      %25 = sbr.rel (0) target = $region25
    $region24: #{tpu_custom_call.1} parent=1 // pred_region
      _
    $region25: #{tpu_custom_call.1} parent=1 // pred_fallthru
      _
    // Predicated region
    $region26: #{tpu_custom_call.1} parent=1 // pred_check
      _
    $region27: #{tpu_custom_call.1} parent=1 // pred_check_branch
      %27 = sbr.rel (0) target = $region29
    $region28: #{tpu_custom_call.1} parent=1 // pred_region
      _
    $region29: #{tpu_custom_call.1} parent=1 // pred_fallthru
      _
    // Predicated region
    $region30: #{tpu_custom_call.1} parent=1 // pred_check
      _
    $region31: #{tpu_custom_call.1} parent=1 // pred_check_branch
      %29 = sbr.rel (0) target = $region33
    $region32: #{tpu_custom_call.1} parent=1 // pred_region
      _
    $region33: #{tpu_custom_call.1} parent=1 // pred_fallthru
      _
    %v30 = vld [vmem:[%s0] sm:$0x3]
    %v31 = vlaneseq
    %v32 = vshrl.u32 %v31, 7
    %v33 = vadd.s32 %v32, 8
    %v34 = vadd.s32 %v32, 16
    %v35 = vadd.s32 %v32, 24
    %v36 = vadd.s32 %v32, 32
    %v37 = vadd.s32 %v32, 40
    %v38 = vadd.s32 %v32, 48
    %v39 = vadd.s32 %v32, 56
    %v40 = vadd.s32 %v32, 64
    %v41 = vadd.s32 %v32, 72
    %v42 = vadd.s32 %v32, 80
    %v43 = vadd.s32 %v32, 88
    %v44 = vadd.s32 %v32, 96
    %v45 = vadd.s32 %v32, 104
    %v46 = vadd.s32 %v32, 112
    %v47 = vadd.s32 %v32, 120
    %v48 = vperm.slane %v30, 0
    %v49 = vperm.slane %v30, 1
    %vm50 = vcmp.eq.s32.totalorder %v32, %v48
    %vm51 = vcmp.eq.s32.totalorder %v32, %v49
    %vm52 = vcmp.eq.s32.totalorder %v33, %v48
    %vm53 = vcmp.eq.s32.totalorder %v33, %v49
    %vm54 = vcmp.eq.s32.totalorder %v34, %v48
    %vm55 = vcmp.eq.s32.totalorder %v34, %v49
    %vm56 = vcmp.eq.s32.totalorder %v35, %v48
    %vm57 = vcmp.eq.s32.totalorder %v35, %v49
    %vm58 = vcmp.eq.s32.totalorder %v36, %v48
    %vm59 = vcmp.eq.s32.totalorder %v36, %v49
    %vm60 = vcmp.eq.s32.totalorder %v37, %v48
    %vm61 = vcmp.eq.s32.totalorder %v37, %v49
    %vm62 = vcmp.eq.s32.totalorder %v38, %v48
    %vm63 = vcmp.eq.s32.totalorder %v38, %v49
    %vm64 = vcmp.eq.s32.totalorder %v39, %v48
    %vm65 = vcmp.eq.s32.totalorder %v39, %v49
    %vm66 = vcmp.eq.s32.totalorder %v40, %v48
    %vm67 = vcmp.eq.s32.totalorder %v40, %v49
    %vm68 = vcmp.eq.s32.totalorder %v41, %v48
    %vm69 = vcmp.eq.s32.totalorder %v41, %v49
    %vm70 = vcmp.eq.s32.totalorder %v42, %v48
    %vm71 = vcmp.eq.s32.totalorder %v42, %v49
    %vm72 = vcmp.eq.s32.totalorder %v43, %v48
    %vm73 = vcmp.eq.s32.totalorder %v43, %v49
    %vm74 = vcmp.eq.s32.totalorder %v44, %v48
    %vm75 = vcmp.eq.s32.totalorder %v44, %v49
    %vm76 = vcmp.eq.s32.totalorder %v45, %v48
    %vm77 = vcmp.eq.s32.totalorder %v45, %v49
    %vm78 = vcmp.eq.s32.totalorder %v46, %v48
    %vm79 = vcmp.eq.s32.totalorder %v46, %v49
    %vm80 = vcmp.eq.s32.totalorder %v47, %v48
    %vm81 = vcmp.eq.s32.totalorder %v47, %v49
    %v82 = vsel %vm50, 1.0, 0.0
    %v83 = vsel %vm51, 1.0, 0.0
    %v84 = vsel %vm52, 1.0, 0.0
    %v85 = vsel %vm53, 1.0, 0.0
    %v86 = vsel %vm54, 1.0, 0.0
    %v87 = vsel %vm55, 1.0, 0.0
    %v88 = vsel %vm56, 1.0, 0.0
    %v89 = vsel %vm57, 1.0, 0.0
    %v90 = vsel %vm58, 1.0, 0.0
    %v91 = vsel %vm59, 1.0, 0.0
    %v92 = vsel %vm60, 1.0, 0.0
    %v93 = vsel %vm61, 1.0, 0.0
    %v94 = vsel %vm62, 1.0, 0.0
    %v95 = vsel %vm63, 1.0, 0.0
    %v96 = vsel %vm64, 1.0, 0.0
    %v97 = vsel %vm65, 1.0, 0.0
    %v98 = vsel %vm66, 1.0, 0.0
    %v99 = vsel %vm67, 1.0, 0.0
    %v100 = vsel %vm68, 1.0, 0.0
    %v101 = vsel %vm69, 1.0, 0.0
    %v102 = vsel %vm70, 1.0, 0.0
    %v103 = vsel %vm71, 1.0, 0.0
    %v104 = vsel %vm72, 1.0, 0.0
    %v105 = vsel %vm73, 1.0, 0.0
    %v106 = vsel %vm74, 1.0, 0.0
    %v107 = vsel %vm75, 1.0, 0.0
    %v108 = vsel %vm76, 1.0, 0.0
    %v109 = vsel %vm77, 1.0, 0.0
    %v110 = vsel %vm78, 1.0, 0.0
    %v111 = vsel %vm79, 1.0, 0.0
    %v112 = vsel %vm80, 1.0, 0.0
    %v113 = vsel %vm81, 1.0, 0.0
    %v114 = vpack.c.bf16 %v84, %v82
    %v115 = vpack.c.bf16 %v85, %v83
    %v116 = vpack.c.bf16 %v88, %v86
    %v117 = vpack.c.bf16 %v89, %v87
    %v118 = vpack.c.bf16 %v92, %v90
    %v119 = vpack.c.bf16 %v93, %v91
    %v120 = vpack.c.bf16 %v96, %v94
    %v121 = vpack.c.bf16 %v97, %v95
    %v122 = vpack.c.bf16 %v100, %v98
    %v123 = vpack.c.bf16 %v101, %v99
    %v124 = vpack.c.bf16 %v104, %v102
    %v125 = vpack.c.bf16 %v105, %v103
    %v126 = vpack.c.bf16 %v108, %v106
    %v127 = vpack.c.bf16 %v109, %v107
    %v128 = vpack.c.bf16 %v112, %v110
    %v129 = vpack.c.bf16 %v113, %v111
    %v130 = vld [vmem:[%s1] sm:$0xf]
    %v131 = vld [vmem:[%s1 + $0x4] sm:$0xf]
    %v132 = vld [vmem:[%s1 + $0x8] sm:$0xf]
    %v133 = vld [vmem:[%s1 + $0xc] sm:$0xf]
    %v134 = vld [vmem:[%s1 + $0x10] sm:$0xf]
    %v135 = vld [vmem:[%s1 + $0x14] sm:$0xf]
    %v136 = vld [vmem:[%s1 + $0x18] sm:$0xf]
    %v137 = vld [vmem:[%s1 + $0x1c] sm:$0xf]
    %v138 = vld [vmem:[%s1 + $0x20] sm:$0xf]
    %v139 = vld [vmem:[%s1 + $0x24] sm:$0xf]
    %v140 = vld [vmem:[%s1 + $0x28] sm:$0xf]
    %v141 = vld [vmem:[%s1 + $0x2c] sm:$0xf]
    %v142 = vld [vmem:[%s1 + $0x30] sm:$0xf]
    %v143 = vld [vmem:[%s1 + $0x34] sm:$0xf]
    %v144 = vld [vmem:[%s1 + $0x38] sm:$0xf]
    %v145 = vld [vmem:[%s1 + $0x3c] sm:$0xf]
    %v162 = vunpack.c.l.b16 %v130
    %v163 = vunpack.c.l.b16 %v131
    %v164 = vunpack.c.l.b16 %v132
    %v165 = vunpack.c.l.b16 %v133
    %v166 = vunpack.c.l.b16 %v134
    %v167 = vunpack.c.l.b16 %v135
    %v168 = vunpack.c.l.b16 %v136
    %v169 = vunpack.c.l.b16 %v137
    %v170 = vunpack.c.l.b16 %v138
    %v171 = vunpack.c.l.b16 %v139
    %v172 = vunpack.c.l.b16 %v140
    %v173 = vunpack.c.l.b16 %v141
    %v174 = vunpack.c.l.b16 %v142
    %v175 = vunpack.c.l.b16 %v143
    %v176 = vunpack.c.l.b16 %v144
    %v177 = vunpack.c.l.b16 %v145
    %v178 = vpack.c.b16 %v163, %v162
    %v179 = vpack.c.b16 %v165, %v164
    %v180 = vpack.c.b16 %v167, %v166
    %v181 = vpack.c.b16 %v169, %v168
    %v182 = vpack.c.b16 %v171, %v170
    %v183 = vpack.c.b16 %v173, %v172
    %v184 = vpack.c.b16 %v175, %v174
    %v185 = vpack.c.b16 %v177, %v176
    %194 = vmatpush.bf16.msra.mxu0 %v128
    %195 = vmatpush.bf16.msra.mxu0 %v126
    %196 = vmatpush.bf16.msra.mxu0 %v124
    %197 = vmatpush.bf16.msra.mxu0 %v122
    %198 = vmatpush.bf16.msra.mxu0 %v120
    %199 = vmatpush.bf16.msra.mxu0 %v118
    %200 = vmatpush.bf16.msra.mxu0 %v116
    %201 = vmatpush.bf16.msra.mxu0 %v114
    %202 = vmatmul.bf16.gmra.mxu0 %v178
    %v203 = vpop.f32.mrf.mxu0
    %v204 = vadd.f32 0.0, %v203
    %v205 = vpop.f32.mrf.mxu0
    %v206 = vadd.f32 0.0, %v205
    %207 = vmatmul.bf16.gmra.mxu0 %v179
    %v208 = vpop.f32.mrf.mxu0
    %v209 = vadd.f32 0.0, %v208
    %v210 = vpop.f32.mrf.mxu0
    %v211 = vadd.f32 0.0, %v210
    %212 = vmatmul.bf16.gmra.mxu0 %v180
    %v213 = vpop.f32.mrf.mxu0
    %v214 = vadd.f32 0.0, %v213
    %v215 = vpop.f32.mrf.mxu0
    %v216 = vadd.f32 0.0, %v215
    %217 = vmatmul.bf16.gmra.mxu0 %v181
    %v218 = vpop.f32.mrf.mxu0
    %v219 = vadd.f32 0.0, %v218
    %v220 = vpop.f32.mrf.mxu0
    %v221 = vadd.f32 0.0, %v220
    %222 = vmatmul.bf16.gmra.mxu0 %v182
    %v223 = vpop.f32.mrf.mxu0
    %v224 = vadd.f32 0.0, %v223
    %v225 = vpop.f32.mrf.mxu0
    %v226 = vadd.f32 0.0, %v225
    %227 = vmatmul.bf16.gmra.mxu0 %v183
    %v228 = vpop.f32.mrf.mxu0
    %v229 = vadd.f32 0.0, %v228
    %v230 = vpop.f32.mrf.mxu0
    %v231 = vadd.f32 0.0, %v230
    %232 = vmatmul.bf16.gmra.mxu0 %v184
    %v233 = vpop.f32.mrf.mxu0
    %v234 = vadd.f32 0.0, %v233
    %v235 = vpop.f32.mrf.mxu0
    %v236 = vadd.f32 0.0, %v235
    %237 = vmatmul.bf16.gmra.mxu0 %v185
    %v238 = vpop.f32.mrf.mxu0
    %v239 = vadd.f32 0.0, %v238
    %v240 = vpop.f32.mrf.mxu0
    %v241 = vadd.f32 0.0, %v240
    %242 = vdwg.mxu0
    %243 = vmatpush.bf16.msra.mxu0 %v129
    %244 = vmatpush.bf16.msra.mxu0 %v127
    %245 = vmatpush.bf16.msra.mxu0 %v125
    %246 = vmatpush.bf16.msra.mxu0 %v123
    %247 = vmatpush.bf16.msra.mxu0 %v121
    %248 = vmatpush.bf16.msra.mxu0 %v119
    %249 = vmatpush.bf16.msra.mxu0 %v117
    %250 = vmatpush.bf16.msra.mxu0 %v115
    %251 = vmatmul.bf16.gmra.mxu0 %v178
    %v252 = vpop.f32.mrf.mxu0
    %v253 = vadd.f32 0.0, %v252
    %v254 = vpop.f32.mrf.mxu0
    %v255 = vadd.f32 0.0, %v254
    %256 = vmatmul.bf16.gmra.mxu0 %v179
    %v257 = vpop.f32.mrf.mxu0
    %v258 = vadd.f32 0.0, %v257
    %v259 = vpop.f32.mrf.mxu0
    %v260 = vadd.f32 0.0, %v259
    %261 = vmatmul.bf16.gmra.mxu0 %v180
    %v262 = vpop.f32.mrf.mxu0
    %v263 = vadd.f32 0.0, %v262
    %v264 = vpop.f32.mrf.mxu0
    %v265 = vadd.f32 0.0, %v264
    %266 = vmatmul.bf16.gmra.mxu0 %v181
    %v267 = vpop.f32.mrf.mxu0
    %v268 = vadd.f32 0.0, %v267
    %v269 = vpop.f32.mrf.mxu0
    %v270 = vadd.f32 0.0, %v269
    %271 = vmatmul.bf16.gmra.mxu0 %v182
    %v272 = vpop.f32.mrf.mxu0
    %v273 = vadd.f32 0.0, %v272
    %v274 = vpop.f32.mrf.mxu0
    %v275 = vadd.f32 0.0, %v274
    %276 = vmatmul.bf16.gmra.mxu0 %v183
    %v277 = vpop.f32.mrf.mxu0
    %v278 = vadd.f32 0.0, %v277
    %v279 = vpop.f32.mrf.mxu0
    %v280 = vadd.f32 0.0, %v279
    %281 = vmatmul.bf16.gmra.mxu0 %v184
    %v282 = vpop.f32.mrf.mxu0
    %v283 = vadd.f32 0.0, %v282
    %v284 = vpop.f32.mrf.mxu0
    %v285 = vadd.f32 0.0, %v284
    %286 = vmatmul.bf16.gmra.mxu0 %v185
    %v287 = vpop.f32.mrf.mxu0
    %v288 = vadd.f32 0.0, %v287
    %v289 = vpop.f32.mrf.mxu0
    %v290 = vadd.f32 0.0, %v289
    %291 = vdwg.mxu0
    %v292 = vpack.c.bf16 %v206, %v204
    %v293 = vpack.c.bf16 %v255, %v253
    %v294 = vpack.c.bf16 %v211, %v209
    %v295 = vpack.c.bf16 %v260, %v258
    %v296 = vpack.c.bf16 %v216, %v214
    %v297 = vpack.c.bf16 %v265, %v263
    %v298 = vpack.c.bf16 %v221, %v219
    %v299 = vpack.c.bf16 %v270, %v268
    %v300 = vpack.c.bf16 %v226, %v224
    %v301 = vpack.c.bf16 %v275, %v273
    %v302 = vpack.c.bf16 %v231, %v229
    %v303 = vpack.c.bf16 %v280, %v278
    %v304 = vpack.c.bf16 %v236, %v234
    %v305 = vpack.c.bf16 %v285, %v283
    %v306 = vpack.c.bf16 %v241, %v239
    %v307 = vpack.c.bf16 %v290, %v288
    %v308 = vld [vmem:[%s2] sm:$0xf]
    %v309 = vld [vmem:[%s2 + $0x4] sm:$0xf]
    %v310 = vld [vmem:[%s2 + $0x8] sm:$0xf]
    %v311 = vld [vmem:[%s2 + $0xc] sm:$0xf]
    %v312 = vld [vmem:[%s2 + $0x10] sm:$0xf]
    %v313 = vld [vmem:[%s2 + $0x14] sm:$0xf]
    %v314 = vld [vmem:[%s2 + $0x18] sm:$0xf]
    %v315 = vld [vmem:[%s2 + $0x1c] sm:$0xf]
    %v316 = vld [vmem:[%s2 + $0x20] sm:$0xf]
    %v317 = vld [vmem:[%s2 + $0x24] sm:$0xf]
    %v318 = vld [vmem:[%s2 + $0x28] sm:$0xf]
    %v319 = vld [vmem:[%s2 + $0x2c] sm:$0xf]
    %v320 = vld [vmem:[%s2 + $0x30] sm:$0xf]
    %v321 = vld [vmem:[%s2 + $0x34] sm:$0xf]
    %v322 = vld [vmem:[%s2 + $0x38] sm:$0xf]
    %v323 = vld [vmem:[%s2 + $0x3c] sm:$0xf]
    %v324 = vld [vmem:[%s3] sm:$0xff]
    %v325 = vld [vmem:[%s3 + $0x8] sm:$0xff]
    %v326 = vld [vmem:[%s3 + $0x10] sm:$0xff]
    %v327 = vld [vmem:[%s3 + $0x18] sm:$0xff]
    %v328 = vld [vmem:[%s3 + $0x20] sm:$0xff]
    %v329 = vld [vmem:[%s3 + $0x28] sm:$0xff]
    %v330 = vld [vmem:[%s3 + $0x30] sm:$0xff]
    %v331 = vld [vmem:[%s3 + $0x38] sm:$0xff]
    %v332 = vld [vmem:[%s3 + $0x40] sm:$0xff]
    %v333 = vld [vmem:[%s3 + $0x48] sm:$0xff]
    %v334 = vld [vmem:[%s3 + $0x50] sm:$0xff]
    %v335 = vld [vmem:[%s3 + $0x58] sm:$0xff]
    %v336 = vld [vmem:[%s3 + $0x60] sm:$0xff]
    %v337 = vld [vmem:[%s3 + $0x68] sm:$0xff]
    %v338 = vld [vmem:[%s3 + $0x70] sm:$0xff]
    %v339 = vld [vmem:[%s3 + $0x78] sm:$0xff]
    %341 = vset.pattern.permute.xlu0 0
    %342 = vperm.xlu0 %341, %v324
    %v343 = vpop.permute.xlu0 %342
    %346 = vset.pattern.permute.xlu0 0
    %347 = vperm.xlu0 %346, %v325
    %v348 = vpop.permute.xlu0 %347
    %351 = vset.pattern.permute.xlu0 0
    %352 = vperm.xlu0 %351, %v326
    %v353 = vpop.permute.xlu0 %352
    %356 = vset.pattern.permute.xlu0 0
    %357 = vperm.xlu0 %356, %v327
    %v358 = vpop.permute.xlu0 %357
    %361 = vset.pattern.permute.xlu0 0
    %362 = vperm.xlu0 %361, %v328
    %v363 = vpop.permute.xlu0 %362
    %366 = vset.pattern.permute.xlu0 0
    %367 = vperm.xlu0 %366, %v329
    %v368 = vpop.permute.xlu0 %367
    %371 = vset.pattern.permute.xlu0 0
    %372 = vperm.xlu0 %371, %v330
    %v373 = vpop.permute.xlu0 %372
    %376 = vset.pattern.permute.xlu0 0
    %377 = vperm.xlu0 %376, %v331
    %v378 = vpop.permute.xlu0 %377
    %381 = vset.pattern.permute.xlu0 0
    %382 = vperm.xlu0 %381, %v332
    %v383 = vpop.permute.xlu0 %382
    %386 = vset.pattern.permute.xlu0 0
    %387 = vperm.xlu0 %386, %v333
    %v388 = vpop.permute.xlu0 %387
    %391 = vset.pattern.permute.xlu0 0
    %392 = vperm.xlu0 %391, %v334
    %v393 = vpop.permute.xlu0 %392
    %396 = vset.pattern.permute.xlu0 0
    %397 = vperm.xlu0 %396, %v335
    %v398 = vpop.permute.xlu0 %397
    %401 = vset.pattern.permute.xlu0 0
    %402 = vperm.xlu0 %401, %v336
    %v403 = vpop.permute.xlu0 %402
    %406 = vset.pattern.permute.xlu0 0
    %407 = vperm.xlu0 %406, %v337
    %v408 = vpop.permute.xlu0 %407
    %411 = vset.pattern.permute.xlu0 0
    %412 = vperm.xlu0 %411, %v338
    %v413 = vpop.permute.xlu0 %412
    %416 = vset.pattern.permute.xlu0 0
    %417 = vperm.xlu0 %416, %v339
    %v418 = vpop.permute.xlu0 %417
    %v436 = vunpack.c.l.b16 %v308
    %v437 = vunpack.c.l.b16 %v309
    %v438 = vunpack.c.l.b16 %v310
    %v439 = vunpack.c.l.b16 %v311
    %v440 = vunpack.c.l.b16 %v312
    %v441 = vunpack.c.l.b16 %v313
    %v442 = vunpack.c.l.b16 %v314
    %v443 = vunpack.c.l.b16 %v315
    %v444 = vunpack.c.l.b16 %v316
    %v445 = vunpack.c.l.b16 %v317
    %v446 = vunpack.c.l.b16 %v318
    %v447 = vunpack.c.l.b16 %v319
    %v448 = vunpack.c.l.b16 %v320
    %v449 = vunpack.c.l.b16 %v321
    %v450 = vunpack.c.l.b16 %v322
    %v451 = vunpack.c.l.b16 %v323
    %v452 = vpack.c.b16 %v437, %v436
    %v453 = vpack.c.b16 %v439, %v438
    %v454 = vpack.c.b16 %v441, %v440
    %v455 = vpack.c.b16 %v443, %v442
    %v456 = vpack.c.b16 %v445, %v444
    %v457 = vpack.c.b16 %v447, %v446
    %v458 = vpack.c.b16 %v449, %v448
    %v459 = vpack.c.b16 %v451, %v450
    %468 = vmatpush.bf16.msra.mxu0 %v306
    %469 = vmatpush.bf16.msra.mxu0 %v304
    %470 = vmatpush.bf16.msra.mxu0 %v302
    %471 = vmatpush.bf16.msra.mxu0 %v300
    %472 = vmatpush.bf16.msra.mxu0 %v298
    %473 = vmatpush.bf16.msra.mxu0 %v296
    %474 = vmatpush.bf16.msra.mxu0 %v294
    %475 = vmatpush.bf16.msra.mxu0 %v292
    %476 = vmatmul.bf16.gmra.mxu0 %v452
    %v477 = vpop.f32.mrf.mxu0
    %v478 = vadd.f32 %v343, %v477
    %v479 = vpop.f32.mrf.mxu0
    %v480 = vadd.f32 %v348, %v479
    %481 = vmatmul.bf16.gmra.mxu0 %v453
    %v482 = vpop.f32.mrf.mxu0
    %v483 = vadd.f32 %v353, %v482
    %v484 = vpop.f32.mrf.mxu0
    %v485 = vadd.f32 %v358, %v484
    %486 = vmatmul.bf16.gmra.mxu0 %v454
    %v487 = vpop.f32.mrf.mxu0
    %v488 = vadd.f32 %v363, %v487
    %v489 = vpop.f32.mrf.mxu0
    %v490 = vadd.f32 %v368, %v489
    %491 = vmatmul.bf16.gmra.mxu0 %v455
    %v492 = vpop.f32.mrf.mxu0
    %v493 = vadd.f32 %v373, %v492
    %v494 = vpop.f32.mrf.mxu0
    %v495 = vadd.f32 %v378, %v494
    %496 = vmatmul.bf16.gmra.mxu0 %v456
    %v497 = vpop.f32.mrf.mxu0
    %v498 = vadd.f32 %v383, %v497
    %v499 = vpop.f32.mrf.mxu0
    %v500 = vadd.f32 %v388, %v499
    %501 = vmatmul.bf16.gmra.mxu0 %v457
    %v502 = vpop.f32.mrf.mxu0
    %v503 = vadd.f32 %v393, %v502
    %v504 = vpop.f32.mrf.mxu0
    %v505 = vadd.f32 %v398, %v504
    %506 = vmatmul.bf16.gmra.mxu0 %v458
    %v507 = vpop.f32.mrf.mxu0
    %v508 = vadd.f32 %v403, %v507
    %v509 = vpop.f32.mrf.mxu0
    %v510 = vadd.f32 %v408, %v509
    %511 = vmatmul.bf16.gmra.mxu0 %v459
    %v512 = vpop.f32.mrf.mxu0
    %v513 = vadd.f32 %v413, %v512
    %v514 = vpop.f32.mrf.mxu0
    %v515 = vadd.f32 %v418, %v514
    %516 = vdwg.mxu0
    %517 = vmatpush.bf16.msra.mxu0 %v307
    %518 = vmatpush.bf16.msra.mxu0 %v305
    %519 = vmatpush.bf16.msra.mxu0 %v303
    %520 = vmatpush.bf16.msra.mxu0 %v301
    %521 = vmatpush.bf16.msra.mxu0 %v299
    %522 = vmatpush.bf16.msra.mxu0 %v297
    %523 = vmatpush.bf16.msra.mxu0 %v295
    %524 = vmatpush.bf16.msra.mxu0 %v293
    %525 = vmatmul.bf16.gmra.mxu0 %v452
    %v526 = vpop.f32.mrf.mxu0
    %v527 = vadd.f32 %v343, %v526
    %v528 = vpop.f32.mrf.mxu0
    %v529 = vadd.f32 %v348, %v528
    %530 = vmatmul.bf16.gmra.mxu0 %v453
    %v531 = vpop.f32.mrf.mxu0
    %v532 = vadd.f32 %v353, %v531
    %v533 = vpop.f32.mrf.mxu0
    %v534 = vadd.f32 %v358, %v533
    %535 = vmatmul.bf16.gmra.mxu0 %v454
    %v536 = vpop.f32.mrf.mxu0
    %v537 = vadd.f32 %v363, %v536
    %v538 = vpop.f32.mrf.mxu0
    %v539 = vadd.f32 %v368, %v538
    %540 = vmatmul.bf16.gmra.mxu0 %v455
    %v541 = vpop.f32.mrf.mxu0
    %v542 = vadd.f32 %v373, %v541
    %v543 = vpop.f32.mrf.mxu0
    %v544 = vadd.f32 %v378, %v543
    %545 = vmatmul.bf16.gmra.mxu0 %v456
    %v546 = vpop.f32.mrf.mxu0
    %v547 = vadd.f32 %v383, %v546
    %v548 = vpop.f32.mrf.mxu0
    %v549 = vadd.f32 %v388, %v548
    %550 = vmatmul.bf16.gmra.mxu0 %v457
    %v551 = vpop.f32.mrf.mxu0
    %v552 = vadd.f32 %v393, %v551
    %v553 = vpop.f32.mrf.mxu0
    %v554 = vadd.f32 %v398, %v553
    %555 = vmatmul.bf16.gmra.mxu0 %v458
    %v556 = vpop.f32.mrf.mxu0
    %v557 = vadd.f32 %v403, %v556
    %v558 = vpop.f32.mrf.mxu0
    %v559 = vadd.f32 %v408, %v558
    %560 = vmatmul.bf16.gmra.mxu0 %v459
    %v561 = vpop.f32.mrf.mxu0
    %v562 = vadd.f32 %v413, %v561
    %v563 = vpop.f32.mrf.mxu0
    %v564 = vadd.f32 %v418, %v563
    %565 = vdwg.mxu0
    %v566 = vmax.f32 %v478, 0.0
    %v567 = vmax.f32 %v527, 0.0
    %v568 = vmax.f32 %v480, 0.0
    %v569 = vmax.f32 %v529, 0.0
    %v570 = vmax.f32 %v483, 0.0
    %v571 = vmax.f32 %v532, 0.0
    %v572 = vmax.f32 %v485, 0.0
    %v573 = vmax.f32 %v534, 0.0
    %v574 = vmax.f32 %v488, 0.0
    %v575 = vmax.f32 %v537, 0.0
    %v576 = vmax.f32 %v490, 0.0
    %v577 = vmax.f32 %v539, 0.0
    %v578 = vmax.f32 %v493, 0.0
    %v579 = vmax.f32 %v542, 0.0
    %v580 = vmax.f32 %v495, 0.0
    %v581 = vmax.f32 %v544, 0.0
    %v582 = vmax.f32 %v498, 0.0
    %v583 = vmax.f32 %v547, 0.0
    %v584 = vmax.f32 %v500, 0.0
    %v585 = vmax.f32 %v549, 0.0
    %v586 = vmax.f32 %v503, 0.0
    %v587 = vmax.f32 %v552, 0.0
    %v588 = vmax.f32 %v505, 0.0
    %v589 = vmax.f32 %v554, 0.0
    %v590 = vmax.f32 %v508, 0.0
    %v591 = vmax.f32 %v557, 0.0
    %v592 = vmax.f32 %v510, 0.0
    %v593 = vmax.f32 %v559, 0.0
    %v594 = vmax.f32 %v513, 0.0
    %v595 = vmax.f32 %v562, 0.0
    %v596 = vmax.f32 %v515, 0.0
    %v597 = vmax.f32 %v564, 0.0
    %v598 = vpack.c.bf16 %v568, %v566
    %v599 = vpack.c.bf16 %v569, %v567
    %v600 = vpack.c.bf16 %v572, %v570
    %v601 = vpack.c.bf16 %v573, %v571
    %v602 = vpack.c.bf16 %v576, %v574
    %v603 = vpack.c.bf16 %v577, %v575
    %v604 = vpack.c.bf16 %v580, %v578
    %v605 = vpack.c.bf16 %v581, %v579
    %v606 = vpack.c.bf16 %v584, %v582
    %v607 = vpack.c.bf16 %v585, %v583
    %v608 = vpack.c.bf16 %v588, %v586
    %v609 = vpack.c.bf16 %v589, %v587
    %v610 = vpack.c.bf16 %v592, %v590
    %v611 = vpack.c.bf16 %v593, %v591
    %v612 = vpack.c.bf16 %v596, %v594
    %v613 = vpack.c.bf16 %v597, %v595
    %v614 = vld [vmem:[%s4] sm:$0xf]
    %v615 = vld [vmem:[%s4 + $0x4] sm:$0xf]
    %v616 = vld [vmem:[%s4 + $0x8] sm:$0xf]
    %v617 = vld [vmem:[%s4 + $0xc] sm:$0xf]
    %v618 = vld [vmem:[%s4 + $0x10] sm:$0xf]
    %v619 = vld [vmem:[%s4 + $0x14] sm:$0xf]
    %v620 = vld [vmem:[%s4 + $0x18] sm:$0xf]
    %v621 = vld [vmem:[%s4 + $0x1c] sm:$0xf]
    %v622 = vld [vmem:[%s4 + $0x20] sm:$0xf]
    %v623 = vld [vmem:[%s4 + $0x24] sm:$0xf]
    %v624 = vld [vmem:[%s4 + $0x28] sm:$0xf]
    %v625 = vld [vmem:[%s4 + $0x2c] sm:$0xf]
    %v626 = vld [vmem:[%s4 + $0x30] sm:$0xf]
    %v627 = vld [vmem:[%s4 + $0x34] sm:$0xf]
    %v628 = vld [vmem:[%s4 + $0x38] sm:$0xf]
    %v629 = vld [vmem:[%s4 + $0x3c] sm:$0xf]
    %v630 = vld [vmem:[%s5] sm:$0xff]
    %v631 = vld [vmem:[%s5 + $0x8] sm:$0xff]
    %v632 = vld [vmem:[%s5 + $0x10] sm:$0xff]
    %v633 = vld [vmem:[%s5 + $0x18] sm:$0xff]
    %v634 = vld [vmem:[%s5 + $0x20] sm:$0xff]
    %v635 = vld [vmem:[%s5 + $0x28] sm:$0xff]
    %v636 = vld [vmem:[%s5 + $0x30] sm:$0xff]
    %v637 = vld [vmem:[%s5 + $0x38] sm:$0xff]
    %v638 = vld [vmem:[%s5 + $0x40] sm:$0xff]
    %v639 = vld [vmem:[%s5 + $0x48] sm:$0xff]
    %v640 = vld [vmem:[%s5 + $0x50] sm:$0xff]
    %v641 = vld [vmem:[%s5 + $0x58] sm:$0xff]
    %v642 = vld [vmem:[%s5 + $0x60] sm:$0xff]
    %v643 = vld [vmem:[%s5 + $0x68] sm:$0xff]
    %v644 = vld [vmem:[%s5 + $0x70] sm:$0xff]
    %v645 = vld [vmem:[%s5 + $0x78] sm:$0xff]
    %647 = vset.pattern.permute.xlu0 0
    %648 = vperm.xlu0 %647, %v630
    %v649 = vpop.permute.xlu0 %648
    %652 = vset.pattern.permute.xlu0 0
    %653 = vperm.xlu0 %652, %v631
    %v654 = vpop.permute.xlu0 %653
    %657 = vset.pattern.permute.xlu0 0
    %658 = vperm.xlu0 %657, %v632
    %v659 = vpop.permute.xlu0 %658
    %662 = vset.pattern.permute.xlu0 0
    %663 = vperm.xlu0 %662, %v633
    %v664 = vpop.permute.xlu0 %663
    %667 = vset.pattern.permute.xlu0 0
    %668 = vperm.xlu0 %667, %v634
    %v669 = vpop.permute.xlu0 %668
    %672 = vset.pattern.permute.xlu0 0
    %673 = vperm.xlu0 %672, %v635
    %v674 = vpop.permute.xlu0 %673
    %677 = vset.pattern.permute.xlu0 0
    %678 = vperm.xlu0 %677, %v636
    %v679 = vpop.permute.xlu0 %678
    %682 = vset.pattern.permute.xlu0 0
    %683 = vperm.xlu0 %682, %v637
    %v684 = vpop.permute.xlu0 %683
    %687 = vset.pattern.permute.xlu0 0
    %688 = vperm.xlu0 %687, %v638
    %v689 = vpop.permute.xlu0 %688
    %692 = vset.pattern.permute.xlu0 0
    %693 = vperm.xlu0 %692, %v639
    %v694 = vpop.permute.xlu0 %693
    %697 = vset.pattern.permute.xlu0 0
    %698 = vperm.xlu0 %697, %v640
    %v699 = vpop.permute.xlu0 %698
    %702 = vset.pattern.permute.xlu0 0
    %703 = vperm.xlu0 %702, %v641
    %v704 = vpop.permute.xlu0 %703
    %707 = vset.pattern.permute.xlu0 0
    %708 = vperm.xlu0 %707, %v642
    %v709 = vpop.permute.xlu0 %708
    %712 = vset.pattern.permute.xlu0 0
    %713 = vperm.xlu0 %712, %v643
    %v714 = vpop.permute.xlu0 %713
    %717 = vset.pattern.permute.xlu0 0
    %718 = vperm.xlu0 %717, %v644
    %v719 = vpop.permute.xlu0 %718
    %722 = vset.pattern.permute.xlu0 0
    %723 = vperm.xlu0 %722, %v645
    %v724 = vpop.permute.xlu0 %723
    %v742 = vunpack.c.l.b16 %v614
    %v743 = vunpack.c.l.b16 %v615
    %v744 = vunpack.c.l.b16 %v616
    %v745 = vunpack.c.l.b16 %v617
    %v746 = vunpack.c.l.b16 %v618
    %v747 = vunpack.c.l.b16 %v619
    %v748 = vunpack.c.l.b16 %v620
    %v749 = vunpack.c.l.b16 %v621
    %v750 = vunpack.c.l.b16 %v622
    %v751 = vunpack.c.l.b16 %v623
    %v752 = vunpack.c.l.b16 %v624
    %v753 = vunpack.c.l.b16 %v625
    %v754 = vunpack.c.l.b16 %v626
    %v755 = vunpack.c.l.b16 %v627
    %v756 = vunpack.c.l.b16 %v628
    %v757 = vunpack.c.l.b16 %v629
    %v758 = vpack.c.b16 %v743, %v742
    %v759 = vpack.c.b16 %v745, %v744
    %v760 = vpack.c.b16 %v747, %v746
    %v761 = vpack.c.b16 %v749, %v748
    %v762 = vpack.c.b16 %v751, %v750
    %v763 = vpack.c.b16 %v753, %v752
    %v764 = vpack.c.b16 %v755, %v754
    %v765 = vpack.c.b16 %v757, %v756
    %774 = vmatpush.bf16.msra.mxu0 %v612
    %775 = vmatpush.bf16.msra.mxu0 %v610
    %776 = vmatpush.bf16.msra.mxu0 %v608
    %777 = vmatpush.bf16.msra.mxu0 %v606
    %778 = vmatpush.bf16.msra.mxu0 %v604
    %779 = vmatpush.bf16.msra.mxu0 %v602
    %780 = vmatpush.bf16.msra.mxu0 %v600
    %781 = vmatpush.bf16.msra.mxu0 %v598
    %782 = vmatmul.bf16.gmra.mxu0 %v758
    %v783 = vpop.f32.mrf.mxu0
    %v784 = vadd.f32 %v649, %v783
    %v785 = vpop.f32.mrf.mxu0
    %v786 = vadd.f32 %v654, %v785
    %787 = vmatmul.bf16.gmra.mxu0 %v759
    %v788 = vpop.f32.mrf.mxu0
    %v789 = vadd.f32 %v659, %v788
    %v790 = vpop.f32.mrf.mxu0
    %v791 = vadd.f32 %v664, %v790
    %792 = vmatmul.bf16.gmra.mxu0 %v760
    %v793 = vpop.f32.mrf.mxu0
    %v794 = vadd.f32 %v669, %v793
    %v795 = vpop.f32.mrf.mxu0
    %v796 = vadd.f32 %v674, %v795
    %797 = vmatmul.bf16.gmra.mxu0 %v761
    %v798 = vpop.f32.mrf.mxu0
    %v799 = vadd.f32 %v679, %v798
    %v800 = vpop.f32.mrf.mxu0
    %v801 = vadd.f32 %v684, %v800
    %802 = vmatmul.bf16.gmra.mxu0 %v762
    %v803 = vpop.f32.mrf.mxu0
    %v804 = vadd.f32 %v689, %v803
    %v805 = vpop.f32.mrf.mxu0
    %v806 = vadd.f32 %v694, %v805
    %807 = vmatmul.bf16.gmra.mxu0 %v763
    %v808 = vpop.f32.mrf.mxu0
    %v809 = vadd.f32 %v699, %v808
    %v810 = vpop.f32.mrf.mxu0
    %v811 = vadd.f32 %v704, %v810
    %812 = vmatmul.bf16.gmra.mxu0 %v764
    %v813 = vpop.f32.mrf.mxu0
    %v814 = vadd.f32 %v709, %v813
    %v815 = vpop.f32.mrf.mxu0
    %v816 = vadd.f32 %v714, %v815
    %817 = vmatmul.bf16.gmra.mxu0 %v765
    %v818 = vpop.f32.mrf.mxu0
    %v819 = vadd.f32 %v719, %v818
    %v820 = vpop.f32.mrf.mxu0
    %v821 = vadd.f32 %v724, %v820
    %822 = vdwg.mxu0
    %823 = vmatpush.bf16.msra.mxu0 %v613
    %824 = vmatpush.bf16.msra.mxu0 %v611
    %825 = vmatpush.bf16.msra.mxu0 %v609
    %826 = vmatpush.bf16.msra.mxu0 %v607
    %827 = vmatpush.bf16.msra.mxu0 %v605
    %828 = vmatpush.bf16.msra.mxu0 %v603
    %829 = vmatpush.bf16.msra.mxu0 %v601
    %830 = vmatpush.bf16.msra.mxu0 %v599
    %831 = vmatmul.bf16.gmra.mxu0 %v758
    %v832 = vpop.f32.mrf.mxu0
    %v833 = vadd.f32 %v649, %v832
    %v834 = vpop.f32.mrf.mxu0
    %v835 = vadd.f32 %v654, %v834
    %836 = vmatmul.bf16.gmra.mxu0 %v759
    %v837 = vpop.f32.mrf.mxu0
    %v838 = vadd.f32 %v659, %v837
    %v839 = vpop.f32.mrf.mxu0
    %v840 = vadd.f32 %v664, %v839
    %841 = vmatmul.bf16.gmra.mxu0 %v760
    %v842 = vpop.f32.mrf.mxu0
    %v843 = vadd.f32 %v669, %v842
    %v844 = vpop.f32.mrf.mxu0
    %v845 = vadd.f32 %v674, %v844
    %846 = vmatmul.bf16.gmra.mxu0 %v761
    %v847 = vpop.f32.mrf.mxu0
    %v848 = vadd.f32 %v679, %v847
    %v849 = vpop.f32.mrf.mxu0
    %v850 = vadd.f32 %v684, %v849
    %851 = vmatmul.bf16.gmra.mxu0 %v762
    %v852 = vpop.f32.mrf.mxu0
    %v853 = vadd.f32 %v689, %v852
    %v854 = vpop.f32.mrf.mxu0
    %v855 = vadd.f32 %v694, %v854
    %856 = vmatmul.bf16.gmra.mxu0 %v763
    %v857 = vpop.f32.mrf.mxu0
    %v858 = vadd.f32 %v699, %v857
    %v859 = vpop.f32.mrf.mxu0
    %v860 = vadd.f32 %v704, %v859
    %861 = vmatmul.bf16.gmra.mxu0 %v764
    %v862 = vpop.f32.mrf.mxu0
    %v863 = vadd.f32 %v709, %v862
    %v864 = vpop.f32.mrf.mxu0
    %v865 = vadd.f32 %v714, %v864
    %866 = vmatmul.bf16.gmra.mxu0 %v765
    %v867 = vpop.f32.mrf.mxu0
    %v868 = vadd.f32 %v719, %v867
    %v869 = vpop.f32.mrf.mxu0
    %v870 = vadd.f32 %v724, %v869
    %871 = vdwg.mxu0
    %v872 = vmax.f32 %v784, 0.0
    %v873 = vmax.f32 %v833, 0.0
    %v874 = vmax.f32 %v786, 0.0
    %v875 = vmax.f32 %v835, 0.0
    %v876 = vmax.f32 %v789, 0.0
    %v877 = vmax.f32 %v838, 0.0
    %v878 = vmax.f32 %v791, 0.0
    %v879 = vmax.f32 %v840, 0.0
    %v880 = vmax.f32 %v794, 0.0
    %v881 = vmax.f32 %v843, 0.0
    %v882 = vmax.f32 %v796, 0.0
    %v883 = vmax.f32 %v845, 0.0
    %v884 = vmax.f32 %v799, 0.0
    %v885 = vmax.f32 %v848, 0.0
    %v886 = vmax.f32 %v801, 0.0
    %v887 = vmax.f32 %v850, 0.0
    %v888 = vmax.f32 %v804, 0.0
    %v889 = vmax.f32 %v853, 0.0
    %v890 = vmax.f32 %v806, 0.0
    %v891 = vmax.f32 %v855, 0.0
    %v892 = vmax.f32 %v809, 0.0
    %v893 = vmax.f32 %v858, 0.0
    %v894 = vmax.f32 %v811, 0.0
    %v895 = vmax.f32 %v860, 0.0
    %v896 = vmax.f32 %v814, 0.0
    %v897 = vmax.f32 %v863, 0.0
    %v898 = vmax.f32 %v816, 0.0
    %v899 = vmax.f32 %v865, 0.0
    %v900 = vmax.f32 %v819, 0.0
    %v901 = vmax.f32 %v868, 0.0
    %v902 = vmax.f32 %v821, 0.0
    %v903 = vmax.f32 %v870, 0.0
    %v904 = vpack.c.bf16 %v874, %v872
    %v905 = vpack.c.bf16 %v875, %v873
    %v906 = vpack.c.bf16 %v878, %v876
    %v907 = vpack.c.bf16 %v879, %v877
    %v908 = vpack.c.bf16 %v882, %v880
    %v909 = vpack.c.bf16 %v883, %v881
    %v910 = vpack.c.bf16 %v886, %v884
    %v911 = vpack.c.bf16 %v887, %v885
    %v912 = vpack.c.bf16 %v890, %v888
    %v913 = vpack.c.bf16 %v891, %v889
    %v914 = vpack.c.bf16 %v894, %v892
    %v915 = vpack.c.bf16 %v895, %v893
    %v916 = vpack.c.bf16 %v898, %v896
    %v917 = vpack.c.bf16 %v899, %v897
    %v918 = vpack.c.bf16 %v902, %v900
    %v919 = vpack.c.bf16 %v903, %v901
    %v920 = vld [vmem:[%s6] sm:$0xf]
    %v921 = vld [vmem:[%s7] sm:$0xff]
    %923 = vset.pattern.permute.xlu0 0
    %924 = vperm.xlu0 %923, %v921
    %v925 = vpop.permute.xlu0 %924
    %927 = vmatpush.bf16.msra.mxu0 %v918
    %928 = vmatpush.bf16.msra.mxu0 %v916
    %929 = vmatpush.bf16.msra.mxu0 %v914
    %930 = vmatpush.bf16.msra.mxu0 %v912
    %931 = vmatpush.bf16.msra.mxu0 %v910
    %932 = vmatpush.bf16.msra.mxu0 %v908
    %933 = vmatpush.bf16.msra.mxu0 %v906
    %934 = vmatpush.bf16.msra.mxu0 %v904
    %935 = vmatmul.bf16.gmra.mxu0 %v920
    %v936 = vpop.f32.mrf.mxu0
    %v937 = vadd.f32 %v925, %v936
    %v938 = vpop.f32.mrf.mxu0
    %939 = vdwg.mxu0
    %940 = vmatpush.bf16.msra.mxu0 %v919
    %941 = vmatpush.bf16.msra.mxu0 %v917
    %942 = vmatpush.bf16.msra.mxu0 %v915
    %943 = vmatpush.bf16.msra.mxu0 %v913
    %944 = vmatpush.bf16.msra.mxu0 %v911
    %945 = vmatpush.bf16.msra.mxu0 %v909
    %946 = vmatpush.bf16.msra.mxu0 %v907
    %947 = vmatpush.bf16.msra.mxu0 %v905
    %948 = vmatmul.bf16.gmra.mxu0 %v920
    %v949 = vpop.f32.mrf.mxu0
    %v950 = vadd.f32 %v925, %v949
    %v951 = vpop.f32.mrf.mxu0
    %952 = vdwg.mxu0
    %953 = vst [vmem:[#allocation2] sm:$0xff] %v937
    %954 = vst [vmem:[#allocation2 + $0x8] sm:$0xff] %v950
    // Predicated region
    $region34: #{tpu_custom_call.1} parent=1 // pred_check
      _
    $region35: #{tpu_custom_call.1} parent=1 // pred_check_branch
      %956 = sbr.rel (0) target = $region37
    $region36: #{tpu_custom_call.1} parent=1 // pred_region
      %958 = vsyncadd [#allocation3], 0
      %s960 = sshll.u32 [#allocation2], 4
      %s961 = int_to_ptr.vmem [resolvable:$true] %s960
      %s962 = sshll.u32 %s8, 4
      %s963 = int_to_ptr.hbm [resolvable:$true] %s962
      %965 = dma.vmem_to_hbm [thread:$0]  %s961, 256, %s963, [#allocation3]
    $region37: #{tpu_custom_call.1} parent=1 // pred_fallthru
      _
    // Predicated region
    $region38: #{tpu_custom_call.1} parent=1 // pred_check
      _
    $region39: #{tpu_custom_call.1} parent=1 // pred_check_branch
      %967 = sbr.rel (0) target = $region41
    $region40: #{tpu_custom_call.1} parent=1 // pred_region
      %969 = dma.done [#allocation3], 256
    $region41: #{tpu_custom_call.1} parent=1 // pred_fallthru
      _
    %970 = vsyncpa [#allocation3], 1

</llo_original>
